<compile_context>
chip_gen: v5e
topology: v5e:2x2
jax: 0.10.0
libtpu: 0.0.40
codegen_flags: <defaults>
</compile_context>

<pallas_src>
import functools

import jax
import jax.numpy as jnp
from jax.experimental import pallas as pl
from jax.experimental.pallas import tpu as pltpu

LANE = 128
# Packed-weight row offsets: [w2 | w3 | w4 | w1] so w1's variable length sits last.
_W2_OFF = 0
_W3_OFF = 128
_W4_OFF = 256
_W1_OFF = 384


def _round_up(x, m):
    return (x + m - 1) // m * m


def mlp_kernel(x_ref, w_ref, b_ref, o_ref, *, d_in, input_size):
    """Whole 4-layer MLP on one batch tile.

    x_ref : (TM, input_size)      f32   input-activation tile (cast in-kernel)
    w_ref : (384 + d_in, 128)     bf16  packed [w2; w3; w4; w1] (zero padded)
    b_ref : (4, 128)              f32   packed [b1; b2; b3; b4] (zero padded)
    o_ref : (TM, 128)             bf16  lane-dense output (cols >= nb_action are 0)
    """
    # Cast to bf16 in VMEM (kernel is DMA/overhead bound, the VPU cast is free).
    x = x_ref[...].astype(jnp.bfloat16)
    if d_in > input_size:  # static (trace-time) zero-pad of the contraction dim
        x = jnp.concatenate(
            [x, jnp.zeros((x.shape[0], d_in - input_size), jnp.bfloat16)], axis=-1)

    # Static, 16-row-aligned slices of the packed bf16 weight buffer.
    w2 = w_ref[_W2_OFF:_W2_OFF + 128, :]
    w3 = w_ref[_W3_OFF:_W3_OFF + 128, :]
    w4 = w_ref[_W4_OFF:_W4_OFF + 128, :]
    w1 = w_ref[_W1_OFF:_W1_OFF + d_in, :]

    b1 = b_ref[0:1, :]
    b2 = b_ref[1:2, :]
    b3 = b_ref[2:3, :]
    b4 = b_ref[3:4, :]

    # bf16 MXU matmuls with f32 accumulation; bias-add / ReLU in f32.
    h = jnp.maximum(
        jnp.dot(x, w1, preferred_element_type=jnp.float32) + b1, 0.0)
    h = jnp.maximum(
        jnp.dot(h.astype(jnp.bfloat16), w2, preferred_element_type=jnp.float32) + b2, 0.0)
    h = jnp.maximum(
        jnp.dot(h.astype(jnp.bfloat16), w3, preferred_element_type=jnp.float32) + b3, 0.0)
    q = jnp.dot(h.astype(jnp.bfloat16), w4, preferred_element_type=jnp.float32) + b4
    o_ref[...] = q.astype(o_ref.dtype)


def pack_params(params):
    """Pack weights/biases into two device buffers.  Call ONCE per weight update.

    Layout: bf16 weights [w2(128); w3(128); w4(128); w1(d_in)] x 128 lanes,
    f32 biases (4, 128).  All layer widths are zero-padded to 128 lanes; padded
    lanes carry zeros end-to-end (zero weight cols -> zero bias -> ReLU(0)=0 ->
    zero weight rows), so the math matches the unpadded network exactly.
    """
    input_size = params["w1"].shape[0]
    assert params["w4"].shape[1] <= LANE, "nb_action must be <= 128"
    assert params["w1"].shape[1] <= LANE and params["w2"].shape[1] <= LANE
    assert params["w3"].shape[1] <= LANE and params["w4"].shape[0] <= LANE

    d_in = _round_up(max(input_size, 16), 16)  # bf16 packs 16 rows per vreg

    def pad2d(w, rows):
        out = jnp.zeros((rows, LANE), jnp.float32)
        return out.at[: w.shape[0], : w.shape[1]].set(w)

    packed_w = jnp.concatenate(
        [
            pad2d(params["w2"], 128),    # rows 0:128
            pad2d(params["w3"], 128),    # rows 128:256
            pad2d(params["w4"], 128),    # rows 256:384
            pad2d(params["w1"], d_in),   # rows 384:384+d_in (16-aligned)
        ],
        axis=0,
    ).astype(jnp.bfloat16)

    packed_b = jnp.zeros((4, LANE), jnp.float32)
    for idx, name in enumerate(("b1", "b2", "b3", "b4")):
        b = params[name].reshape(-1)
        packed_b = packed_b.at[idx, : b.shape[0]].set(b)

    return packed_w, packed_b


@functools.partial(jax.jit, static_argnames=("nb_action", "tile_m"))
def network_forward(state, packed_w, packed_b, *, nb_action, tile_m=1024):
    """Pallas TPU forward pass (hot path).

    state    : [B, input_size] float32
    packed_w : [384 + d_in, 128] bfloat16   (from pack_params)
    packed_b : [4, 128] float32             (from pack_params)
    returns q_values: [B, nb_action] float32
    """
    B, input_size = state.shape
    d_in = packed_w.shape[0] - 3 * LANE

    # Tile sizing: >=2 tiles when possible (feeds both v7x TensorCores through
    # dimension_semantics=("parallel",)), <8 dead rows of padding per tile.
    n_tiles = min(max(pl.cdiv(B, tile_m), 2), pl.cdiv(B, 8))
    n_tiles = max(n_tiles, 1)
    tm = _round_up(pl.cdiv(B, n_tiles), 8)
    n_tiles = pl.cdiv(B, tm)

    kernel = functools.partial(mlp_kernel, d_in=d_in, input_size=input_size)

    out = pl.pallas_call(
        kernel,
        out_shape=jax.ShapeDtypeStruct((B, LANE), jnp.bfloat16),
        grid=(n_tiles,),
        in_specs=[
            # Activations: batch-tiled, f32 straight from HBM (cast in-kernel).
            pl.BlockSpec((tm, input_size), lambda i: (i, 0)),
            # Packed weights / biases: same block every step -> VMEM resident.
            pl.BlockSpec(packed_w.shape, lambda i: (0, 0)),
            pl.BlockSpec(packed_b.shape, lambda i: (0, 0)),
        ],
        out_specs=pl.BlockSpec((tm, LANE), lambda i: (i, 0)),
        compiler_params=pltpu.CompilerParams(
            dimension_semantics=("parallel",)),
    )(state, packed_w, packed_b)

    # Tiny fused slice + cast back to the module's f32 (B, nb_action) contract.
    return out[:, :nb_action].astype(jnp.float32)


def init_params(key, input_size, nb_action):
    """Deterministic init mimicking PyTorch nn.Linear default (U[-1/sqrt(fan_in), +])."""
    dims = [(input_size, 128), (128, 128), (128, 64), (64, nb_action)]
    params = {}
    for idx, (fan_in, fan_out) in enumerate(dims, start=1):
        key, kw, kb = jax.random.split(key, 3)
        bound = 1.0 / jnp.sqrt(jnp.float32(fan_in))
        params[f"w{idx}"] = jax.random.uniform(
            kw, (fan_in, fan_out), jnp.float32, -bound, bound)
        params[f"b{idx}"] = jax.random.uniform(
            kb, (1, fan_out), jnp.float32, -bound, bound)
    return params


def reference_forward(state, params):
    h = jnp.maximum(state @ params["w1"] + params["b1"], 0.0)
    h = jnp.maximum(h @ params["w2"] + params["b2"], 0.0)
    h = jnp.maximum(h @ params["w3"] + params["b3"], 0.0)
    return h @ params["w4"] + params["b4"]


if __name__ == "__main__":
    batch = 8
    input_size = 16
    nb_action = 4

    key = jax.random.PRNGKey(0)
    key, kx = jax.random.split(key)
    state = jax.random.normal(kx, (batch, input_size), jnp.float32)
    params = init_params(key, input_size, nb_action)

    # Pack ONCE (outside the per-step path); only the packed buffers are hot.
    packed_w, packed_b = pack_params(params)
    packed_w, packed_b = jax.block_until_ready((packed_w, packed_b))

    q_values = network_forward(state, packed_w, packed_b, nb_action=nb_action)
    q_values = jax.block_until_ready(q_values)

    ref = reference_forward(state, params)
    assert q_values.shape == (batch, nb_action)
    # bf16 matmul operands + bf16 output slab (f32 accumulation) -> bf16-level tol.
    max_err = float(jnp.max(jnp.abs(q_values - ref)))
    assert jnp.allclose(q_values, ref, atol=3e-2, rtol=3e-2), max_err

    print("KERNEL_OK")
</pallas_src>

<mosaic_0001>
module attributes {stable_mosaic.version = 11 : i64} {
  func.func @mlp_kernel(%arg0: i32, %arg1: memref<8x16xf32, #tpu.memory_space<vmem>>, %arg2: memref<400x128xbf16, #tpu.memory_space<vmem>>, %arg3: memref<4x128xf32, #tpu.memory_space<vmem>>, %arg4: memref<8x128xbf16, #tpu.memory_space<vmem>>) attributes {dimension_semantics = [#tpu.dimension_semantics<parallel>], iteration_bounds = array<i64: 1>, scalar_prefetch = 0 : i64, scratch_operands = 0 : i64, tpu.core_type = #tpu.core_type<tc>, window_params = [{transform_indices = @transform_0, window_bounds = array<i64: 8, 16>}, {pipeline_mode = #tpu.pipeline_mode<synchronous>, transform_indices = @transform_1, window_bounds = array<i64: 400, 128>}, {pipeline_mode = #tpu.pipeline_mode<synchronous>, transform_indices = @transform_2, window_bounds = array<i64: 4, 128>}, {transform_indices = @transform_3, window_bounds = array<i64: 8, 128>}]} {
    %c0 = arith.constant 0 : index
    %c0_0 = arith.constant 0 : index
    %0 = vector.load %arg1[%c0, %c0_0] : memref<8x16xf32, #tpu.memory_space<vmem>>, vector<8x16xf32>
    %1 = arith.truncf %0 : vector<8x16xf32> to vector<8x16xbf16>
    %c0_1 = arith.constant 0 : index
    %c0_2 = arith.constant 0 : index
    %2 = vector.load %arg2[%c0_1, %c0_2] : memref<400x128xbf16, #tpu.memory_space<vmem>>, vector<128x128xbf16>
    %c128 = arith.constant 128 : index
    %c0_3 = arith.constant 0 : index
    %3 = vector.load %arg2[%c128, %c0_3] : memref<400x128xbf16, #tpu.memory_space<vmem>>, vector<128x128xbf16>
    %c256 = arith.constant 256 : index
    %c0_4 = arith.constant 0 : index
    %4 = vector.load %arg2[%c256, %c0_4] : memref<400x128xbf16, #tpu.memory_space<vmem>>, vector<128x128xbf16>
    %c384 = arith.constant 384 : index
    %c0_5 = arith.constant 0 : index
    %5 = vector.load %arg2[%c384, %c0_5] : memref<400x128xbf16, #tpu.memory_space<vmem>>, vector<16x128xbf16>
    %c0_6 = arith.constant 0 : index
    %c0_7 = arith.constant 0 : index
    %6 = vector.load %arg3[%c0_6, %c0_7] : memref<4x128xf32, #tpu.memory_space<vmem>>, vector<1x128xf32>
    %c1 = arith.constant 1 : index
    %c0_8 = arith.constant 0 : index
    %7 = vector.load %arg3[%c1, %c0_8] : memref<4x128xf32, #tpu.memory_space<vmem>>, vector<1x128xf32>
    %c2 = arith.constant 2 : index
    %c0_9 = arith.constant 0 : index
    %8 = vector.load %arg3[%c2, %c0_9] : memref<4x128xf32, #tpu.memory_space<vmem>>, vector<1x128xf32>
    %c3 = arith.constant 3 : index
    %c0_10 = arith.constant 0 : index
    %9 = vector.load %arg3[%c3, %c0_10] : memref<4x128xf32, #tpu.memory_space<vmem>>, vector<1x128xf32>
    %cst = arith.constant dense<0.000000e+00> : vector<8x128xf32>
    %10 = tpu.matmul %1, %5, %cst {dimension_numbers = #tpu.dot_dimension_numbers<[1], [0], [0], [1], [0, 0, 1, 1], [], []>} : vector<8x16xbf16>, vector<16x128xbf16>, vector<8x128xf32> -> vector<8x128xf32>
    %11 = vector.broadcast %6 : vector<1x128xf32> to vector<8x128xf32>
    %12 = arith.addf %10, %11 : vector<8x128xf32>
    %cst_11 = arith.constant 0.000000e+00 : f32
    %13 = vector.broadcast %cst_11 : f32 to vector<8x128xf32>
    %14 = arith.maximumf %12, %13 : vector<8x128xf32>
    %15 = arith.truncf %14 : vector<8x128xf32> to vector<8x128xbf16>
    %cst_12 = arith.constant dense<0.000000e+00> : vector<8x128xf32>
    %16 = tpu.matmul %15, %2, %cst_12 {dimension_numbers = #tpu.dot_dimension_numbers<[1], [0], [0], [1], [0, 0, 1, 1], [], []>} : vector<8x128xbf16>, vector<128x128xbf16>, vector<8x128xf32> -> vector<8x128xf32>
    %17 = vector.broadcast %7 : vector<1x128xf32> to vector<8x128xf32>
    %18 = arith.addf %16, %17 : vector<8x128xf32>
    %cst_13 = arith.constant 0.000000e+00 : f32
    %19 = vector.broadcast %cst_13 : f32 to vector<8x128xf32>
    %20 = arith.maximumf %18, %19 : vector<8x128xf32>
    %21 = arith.truncf %20 : vector<8x128xf32> to vector<8x128xbf16>
    %cst_14 = arith.constant dense<0.000000e+00> : vector<8x128xf32>
    %22 = tpu.matmul %21, %3, %cst_14 {dimension_numbers = #tpu.dot_dimension_numbers<[1], [0], [0], [1], [0, 0, 1, 1], [], []>} : vector<8x128xbf16>, vector<128x128xbf16>, vector<8x128xf32> -> vector<8x128xf32>
    %23 = vector.broadcast %8 : vector<1x128xf32> to vector<8x128xf32>
    %24 = arith.addf %22, %23 : vector<8x128xf32>
    %cst_15 = arith.constant 0.000000e+00 : f32
    %25 = vector.broadcast %cst_15 : f32 to vector<8x128xf32>
    %26 = arith.maximumf %24, %25 : vector<8x128xf32>
    %27 = arith.truncf %26 : vector<8x128xf32> to vector<8x128xbf16>
    %cst_16 = arith.constant dense<0.000000e+00> : vector<8x128xf32>
    %28 = tpu.matmul %27, %4, %cst_16 {dimension_numbers = #tpu.dot_dimension_numbers<[1], [0], [0], [1], [0, 0, 1, 1], [], []>} : vector<8x128xbf16>, vector<128x128xbf16>, vector<8x128xf32> -> vector<8x128xf32>
    %29 = vector.broadcast %9 : vector<1x128xf32> to vector<8x128xf32>
    %30 = arith.addf %28, %29 : vector<8x128xf32>
    %31 = arith.truncf %30 : vector<8x128xf32> to vector<8x128xbf16>
    %c0_17 = arith.constant 0 : index
    %c0_18 = arith.constant 0 : index
    %32 = vector.load %arg4[%c0_17, %c0_18] : memref<8x128xbf16, #tpu.memory_space<vmem>>, vector<8x128xbf16>
    tpu.vector_store %arg4[%c0_17, %c0_18], %31 {strides = array<i32>} : memref<8x128xbf16, #tpu.memory_space<vmem>>, vector<8x128xbf16>,
    return
  }
  func.func @transform_0(%arg0: i32) -> (i32, i32) {
    %c0_i32 = arith.constant 0 : i32
    %c0_i32_0 = arith.constant 0 : i32
    return %arg0, %c0_i32 : i32, i32
  }
  func.func @transform_1(%arg0: i32) -> (i32, i32) {
    %c0_i32 = arith.constant 0 : i32
    %c0_i32_0 = arith.constant 0 : i32
    %c0_i32_1 = arith.constant 0 : i32
    return %c0_i32, %c0_i32_0 : i32, i32
  }
  func.func @transform_2(%arg0: i32) -> (i32, i32) {
    %c0_i32 = arith.constant 0 : i32
    %c0_i32_0 = arith.constant 0 : i32
    %c0_i32_1 = arith.constant 0 : i32
    return %c0_i32, %c0_i32_0 : i32, i32
  }
  func.func @transform_3(%arg0: i32) -> (i32, i32) {
    %c0_i32 = arith.constant 0 : i32
    %c0_i32_0 = arith.constant 0 : i32
    return %arg0, %c0_i32 : i32, i32
  }
}

</mosaic_0001>

<llo_original>
// kernel: network_forward.1
$region0: #{network_forward.1}
  #allocation0 [shape = 'u32[]', space=smem, size = 0x4, offset = 0x4, fixed_abs, tag = 'smem constant byte address 0x4 - core index']
  #allocation1 [shape = 'u32[72,128]{1,0:T(1,128)}', space=vmem, size = 0x9000, scoped, tag = 'internal scratch']
  %s0 = inlined_call_operand.hbm [shape: f32[8,16], index: 0, kind: input, shape index: {}]
  %s1 = inlined_call_operand.hbm [shape: bf16[400,128], index: 1, kind: input, shape index: {}]
  %s2 = inlined_call_operand.hbm [shape: f32[4,128], index: 2, kind: input, shape index: {}]
  %s3 = inlined_call_operand.vmem [shape: bf16[8,128], index: 3, kind: output, shape index: {}]
  %s4 = sld [smem:[#allocation0]]
  $region34: #{network_forward.1} parent=0
    _
  %s6 = ssub.s32 1, %s4
  %s7 = scalar_select 0, %s6, %s4
  $region1: #{network_forward.1} parent=0
    #allocation2 [shape = 'u8[4096]{0}', space=vmem, size = 0x1000, scoped, tag = 'input window, operand 0, single buffered']
    #allocation3 [shape = 's32[1]{0}', space=sflag, size = 0x4, scoped, tag = 'scoped memory for network_forward.1']
    #allocation4 [shape = 'u8[102400]{0}', space=vmem, size = 0x19000, scoped, tag = 'input window, operand 1, single buffered']
    #allocation5 [shape = 's32[1]{0}', space=sflag, size = 0x4, scoped, tag = 'scoped memory for network_forward.1']
    #allocation6 [shape = 'u8[2048]{0}', space=vmem, size = 0x800, scoped, tag = 'input window, operand 2, single buffered']
    %8 = vsyncpa [#allocation3], 0
    %9 = vsyncpa [#allocation5], 0
    // Predicated region
    $region2: #{network_forward.1} parent=1 // pred_check
      _
    $region3: #{network_forward.1} parent=1 // pred_check_branch
      %11 = sbr.rel (0) target = $region5
    $region4: #{network_forward.1} parent=1 // pred_region
      %13 = vsyncadd [#allocation3], 0
      %s15 = sshll.u32 %s0, 4
      %s16 = int_to_ptr.hbm [resolvable:$true] %s15
      %s17 = sshll.u32 [#allocation2], 4
      %s18 = int_to_ptr.vmem [resolvable:$true] %s17
      %20 = dma.hbm_to_vmem [thread:$0]  %s16, 128, %s18, [#allocation3]
    $region5: #{network_forward.1} parent=1 // pred_fallthru
      _
    // Predicated region
    $region6: #{network_forward.1} parent=1 // pred_check
      _
    $region7: #{network_forward.1} parent=1 // pred_check_branch
      %22 = sbr.rel (0) target = $region9
    $region8: #{network_forward.1} parent=1 // pred_region
      %24 = vsyncadd [#allocation5], 0
      %s25 = sshll.u32 %s1, 4
      %s26 = int_to_ptr.hbm [resolvable:$true] %s25
      %s27 = sshll.u32 [#allocation4], 4
      %s28 = int_to_ptr.vmem [resolvable:$true] %s27
      %33 = dma.hbm_to_vmem [thread:$0]  %s26, 3200, %s28, [#allocation5], 64, 64, 4
    $region9: #{network_forward.1} parent=1 // pred_fallthru
      _
    // Predicated region
    $region10: #{network_forward.1} parent=1 // pred_check
      _
    $region11: #{network_forward.1} parent=1 // pred_check_branch
      %35 = sbr.rel (0) target = $region13
    $region12: #{network_forward.1} parent=1 // pred_region
      %37 = vsyncadd [#allocation5], 0
      %s39 = sshll.u32 %s2, 4
      %s40 = int_to_ptr.hbm [resolvable:$true] %s39
      %s41 = sshll.u32 [#allocation6], 4
      %s42 = int_to_ptr.vmem [resolvable:$true] %s41
      %44 = dma.hbm_to_vmem [thread:$0]  %s40, 64, %s42, [#allocation5]
    $region13: #{network_forward.1} parent=1 // pred_fallthru
      _
    // Predicated region
    $region14: #{network_forward.1} parent=1 // pred_check
      _
    $region15: #{network_forward.1} parent=1 // pred_check_branch
      %46 = sbr.rel (0) target = $region17
    $region16: #{network_forward.1} parent=1 // pred_region
      %48 = dma.done [#allocation3], 128
    $region17: #{network_forward.1} parent=1 // pred_fallthru
      _
    // Predicated region
    $region18: #{network_forward.1} parent=1 // pred_check
      _
    $region19: #{network_forward.1} parent=1 // pred_check_branch
      %50 = sbr.rel (0) target = $region21
    $region20: #{network_forward.1} parent=1 // pred_region
      %52 = dma.done [#allocation5], 3200
    $region21: #{network_forward.1} parent=1 // pred_fallthru
      _
    // Predicated region
    $region22: #{network_forward.1} parent=1 // pred_check
      _
    $region23: #{network_forward.1} parent=1 // pred_check_branch
      %54 = sbr.rel (0) target = $region25
    $region24: #{network_forward.1} parent=1 // pred_region
      %56 = dma.done [#allocation5], 64
    $region25: #{network_forward.1} parent=1 // pred_fallthru
      _
    %v58 = vld [vmem:[#allocation2] sm:$0xff]
    %v59 = vpack.c.bf16 %v58, %v58
    %v60 = vld [vmem:[#allocation4] sm:$0xf]
    %v61 = vld [vmem:[#allocation4 + $0x4] sm:$0xf]
    %v62 = vld [vmem:[#allocation4 + $0x8] sm:$0xf]
    %v63 = vld [vmem:[#allocation4 + $0xc] sm:$0xf]
    %v64 = vld [vmem:[#allocation4 + $0x10] sm:$0xf]
    %v65 = vld [vmem:[#allocation4 + $0x14] sm:$0xf]
    %v66 = vld [vmem:[#allocation4 + $0x18] sm:$0xf]
    %v67 = vld [vmem:[#allocation4 + $0x1c] sm:$0xf]
    %v68 = vld [vmem:[#allocation4 + $0x20] sm:$0xf]
    %v69 = vld [vmem:[#allocation4 + $0x24] sm:$0xf]
    %v70 = vld [vmem:[#allocation4 + $0x28] sm:$0xf]
    %v71 = vld [vmem:[#allocation4 + $0x2c] sm:$0xf]
    %v72 = vld [vmem:[#allocation4 + $0x30] sm:$0xf]
    %v73 = vld [vmem:[#allocation4 + $0x34] sm:$0xf]
    %v74 = vld [vmem:[#allocation4 + $0x38] sm:$0xf]
    %v75 = vld [vmem:[#allocation4 + $0x3c] sm:$0xf]
    %v76 = vld [vmem:[#allocation4 + $0x40] sm:$0xf]
    %v77 = vld [vmem:[#allocation4 + $0x44] sm:$0xf]
    %v78 = vld [vmem:[#allocation4 + $0x48] sm:$0xf]
    %v79 = vld [vmem:[#allocation4 + $0x4c] sm:$0xf]
    %v80 = vld [vmem:[#allocation4 + $0x50] sm:$0xf]
    %v81 = vld [vmem:[#allocation4 + $0x54] sm:$0xf]
    %v82 = vld [vmem:[#allocation4 + $0x58] sm:$0xf]
    %v83 = vld [vmem:[#allocation4 + $0x5c] sm:$0xf]
    %v84 = vld [vmem:[#allocation4 + $0x60] sm:$0xf]
    %v85 = vld [vmem:[#allocation4 + $0x64] sm:$0xf]
    %v86 = vld [vmem:[#allocation4 + $0x68] sm:$0xf]
    %v87 = vld [vmem:[#allocation4 + $0x6c] sm:$0xf]
    %v88 = vld [vmem:[#allocation4 + $0x70] sm:$0xf]
    %v89 = vld [vmem:[#allocation4 + $0x74] sm:$0xf]
    %v90 = vld [vmem:[#allocation4 + $0x78] sm:$0xf]
    %v91 = vld [vmem:[#allocation4 + $0x7c] sm:$0xf]
    %v92 = vld [vmem:[#allocation4 + $0x80] sm:$0xf]
    %v93 = vld [vmem:[#allocation4 + $0x84] sm:$0xf]
    %v94 = vld [vmem:[#allocation4 + $0x88] sm:$0xf]
    %v95 = vld [vmem:[#allocation4 + $0x8c] sm:$0xf]
    %v96 = vld [vmem:[#allocation4 + $0x90] sm:$0xf]
    %v97 = vld [vmem:[#allocation4 + $0x94] sm:$0xf]
    %v98 = vld [vmem:[#allocation4 + $0x98] sm:$0xf]
    %v99 = vld [vmem:[#allocation4 + $0x9c] sm:$0xf]
    %v100 = vld [vmem:[#allocation4 + $0xa0] sm:$0xf]
    %v101 = vld [vmem:[#allocation4 + $0xa4] sm:$0xf]
    %v102 = vld [vmem:[#allocation4 + $0xa8] sm:$0xf]
    %v103 = vld [vmem:[#allocation4 + $0xac] sm:$0xf]
    %v104 = vld [vmem:[#allocation4 + $0xb0] sm:$0xf]
    %v105 = vld [vmem:[#allocation4 + $0xb4] sm:$0xf]
    %v106 = vld [vmem:[#allocation4 + $0xb8] sm:$0xf]
    %v107 = vld [vmem:[#allocation4 + $0xbc] sm:$0xf]
    %v108 = vld [vmem:[#allocation4 + $0xc0] sm:$0xf]
    %v109 = vld [vmem:[#allocation4 + $0xc4] sm:$0xf]
    %v110 = vld [vmem:[#allocation6] sm:$0x1]
    %v111 = vld [vmem:[#allocation6 + $0x1] sm:$0x1]
    %v112 = vld [vmem:[#allocation6 + $0x2] sm:$0x1]
    %v113 = vld [vmem:[#allocation6 + $0x3] sm:$0x1]
    %v114 = vperm.slane %v110, 0
    %v117 = vunpack.c.l.b16 %v108
    %v118 = vunpack.c.l.b16 %v109
    %v119 = vpack.c.b16 %v118, %v117
    %vm121 = vcmask 130048
    %v123 = vsel %vm121, %v59, 0
    %125 = vmatpush.bf16.msra.mxu0 0
    %126 = vmatpush.bf16.msra.mxu0 0
    %127 = vmatpush.bf16.msra.mxu0 0
    %128 = vmatpush.bf16.msra.mxu0 0
    %129 = vmatpush.bf16.msra.mxu0 0
    %130 = vmatpush.bf16.msra.mxu0 0
    %131 = vmatpush.bf16.msra.mxu0 0
    %132 = vmatpush.bf16.msra.mxu0 %v119
    %133 = vmatmul.bf16.gmra.mxu0 %v123
    %v134 = vpop.f32.mrf.mxu0
    %v135 = vadd.f32 %v114, %v134
    %v136 = vpop.f32.mrf.mxu0
    %137 = vdwg.mxu0
    %v138 = vmax.f32 %v135, 0.0
    %v139 = vpack.c.bf16 %v138, %v138
    %v140 = vperm.slane %v111, 0
    %v157 = vunpack.c.l.b16 %v60
    %v158 = vunpack.c.l.b16 %v61
    %v159 = vunpack.c.l.b16 %v62
    %v160 = vunpack.c.l.b16 %v63
    %v161 = vunpack.c.l.b16 %v64
    %v162 = vunpack.c.l.b16 %v65
    %v163 = vunpack.c.l.b16 %v66
    %v164 = vunpack.c.l.b16 %v67
    %v165 = vunpack.c.l.b16 %v68
    %v166 = vunpack.c.l.b16 %v69
    %v167 = vunpack.c.l.b16 %v70
    %v168 = vunpack.c.l.b16 %v71
    %v169 = vunpack.c.l.b16 %v72
    %v170 = vunpack.c.l.b16 %v73
    %v171 = vunpack.c.l.b16 %v74
    %v172 = vunpack.c.l.b16 %v75
    %v173 = vpack.c.b16 %v158, %v157
    %v174 = vpack.c.b16 %v160, %v159
    %v175 = vpack.c.b16 %v162, %v161
    %v176 = vpack.c.b16 %v164, %v163
    %v177 = vpack.c.b16 %v166, %v165
    %v178 = vpack.c.b16 %v168, %v167
    %v179 = vpack.c.b16 %v170, %v169
    %v180 = vpack.c.b16 %v172, %v171
    %189 = vmatpush.bf16.msra.mxu0 %v180
    %190 = vmatpush.bf16.msra.mxu0 %v179
    %191 = vmatpush.bf16.msra.mxu0 %v178
    %192 = vmatpush.bf16.msra.mxu0 %v177
    %193 = vmatpush.bf16.msra.mxu0 %v176
    %194 = vmatpush.bf16.msra.mxu0 %v175
    %195 = vmatpush.bf16.msra.mxu0 %v174
    %196 = vmatpush.bf16.msra.mxu0 %v173
    %197 = vmatmul.bf16.gmra.mxu0 %v139
    %v198 = vpop.f32.mrf.mxu0
    %v199 = vadd.f32 %v140, %v198
    %v200 = vpop.f32.mrf.mxu0
    %201 = vdwg.mxu0
    %v202 = vmax.f32 %v199, 0.0
    %v203 = vpack.c.bf16 %v202, %v202
    %v204 = vperm.slane %v112, 0
    %v221 = vunpack.c.l.b16 %v76
    %v222 = vunpack.c.l.b16 %v77
    %v223 = vunpack.c.l.b16 %v78
    %v224 = vunpack.c.l.b16 %v79
    %v225 = vunpack.c.l.b16 %v80
    %v226 = vunpack.c.l.b16 %v81
    %v227 = vunpack.c.l.b16 %v82
    %v228 = vunpack.c.l.b16 %v83
    %v229 = vunpack.c.l.b16 %v84
    %v230 = vunpack.c.l.b16 %v85
    %v231 = vunpack.c.l.b16 %v86
    %v232 = vunpack.c.l.b16 %v87
    %v233 = vunpack.c.l.b16 %v88
    %v234 = vunpack.c.l.b16 %v89
    %v235 = vunpack.c.l.b16 %v90
    %v236 = vunpack.c.l.b16 %v91
    %v237 = vpack.c.b16 %v222, %v221
    %v238 = vpack.c.b16 %v224, %v223
    %v239 = vpack.c.b16 %v226, %v225
    %v240 = vpack.c.b16 %v228, %v227
    %v241 = vpack.c.b16 %v230, %v229
    %v242 = vpack.c.b16 %v232, %v231
    %v243 = vpack.c.b16 %v234, %v233
    %v244 = vpack.c.b16 %v236, %v235
    %253 = vmatpush.bf16.msra.mxu0 %v244
    %254 = vmatpush.bf16.msra.mxu0 %v243
    %255 = vmatpush.bf16.msra.mxu0 %v242
    %256 = vmatpush.bf16.msra.mxu0 %v241
    %257 = vmatpush.bf16.msra.mxu0 %v240
    %258 = vmatpush.bf16.msra.mxu0 %v239
    %259 = vmatpush.bf16.msra.mxu0 %v238
    %260 = vmatpush.bf16.msra.mxu0 %v237
    %261 = vmatmul.bf16.gmra.mxu0 %v203
    %v262 = vpop.f32.mrf.mxu0
    %v263 = vadd.f32 %v204, %v262
    %v264 = vpop.f32.mrf.mxu0
    %265 = vdwg.mxu0
    %v266 = vmax.f32 %v263, 0.0
    %v267 = vpack.c.bf16 %v266, %v266
    %v268 = vperm.slane %v113, 0
    %v285 = vunpack.c.l.b16 %v92
    %v286 = vunpack.c.l.b16 %v93
    %v287 = vunpack.c.l.b16 %v94
    %v288 = vunpack.c.l.b16 %v95
    %v289 = vunpack.c.l.b16 %v96
    %v290 = vunpack.c.l.b16 %v97
    %v291 = vunpack.c.l.b16 %v98
    %v292 = vunpack.c.l.b16 %v99
    %v293 = vunpack.c.l.b16 %v100
    %v294 = vunpack.c.l.b16 %v101
    %v295 = vunpack.c.l.b16 %v102
    %v296 = vunpack.c.l.b16 %v103
    %v297 = vunpack.c.l.b16 %v104
    %v298 = vunpack.c.l.b16 %v105
    %v299 = vunpack.c.l.b16 %v106
    %v300 = vunpack.c.l.b16 %v107
    %v301 = vpack.c.b16 %v286, %v285
    %v302 = vpack.c.b16 %v288, %v287
    %v303 = vpack.c.b16 %v290, %v289
    %v304 = vpack.c.b16 %v292, %v291
    %v305 = vpack.c.b16 %v294, %v293
    %v306 = vpack.c.b16 %v296, %v295
    %v307 = vpack.c.b16 %v298, %v297
    %v308 = vpack.c.b16 %v300, %v299
    %317 = vmatpush.bf16.msra.mxu0 %v308
    %318 = vmatpush.bf16.msra.mxu0 %v307
    %319 = vmatpush.bf16.msra.mxu0 %v306
    %320 = vmatpush.bf16.msra.mxu0 %v305
    %321 = vmatpush.bf16.msra.mxu0 %v304
    %322 = vmatpush.bf16.msra.mxu0 %v303
    %323 = vmatpush.bf16.msra.mxu0 %v302
    %324 = vmatpush.bf16.msra.mxu0 %v301
    %325 = vmatmul.bf16.gmra.mxu0 %v267
    %v326 = vpop.f32.mrf.mxu0
    %v327 = vadd.f32 %v268, %v326
    %v328 = vpop.f32.mrf.mxu0
    %329 = vdwg.mxu0
    %v330 = vpack.c.bf16 %v327, %v327
    %331 = vst [vmem:[%s3] sm:$0xf] %v330
    // Predicated region
    $region26: #{network_forward.1} parent=1 // pred_check
      _
    $region27: #{network_forward.1} parent=1 // pred_check_branch
      %333 = sbr.rel (0) target = $region29
    $region28: #{network_forward.1} parent=1 // pred_region
      _
    $region29: #{network_forward.1} parent=1 // pred_fallthru
      _
    // Predicated region
    $region30: #{network_forward.1} parent=1 // pred_check
      _
    $region31: #{network_forward.1} parent=1 // pred_check_branch
      %335 = sbr.rel (0) target = $region33
    $region32: #{network_forward.1} parent=1 // pred_region
      _
    $region33: #{network_forward.1} parent=1 // pred_fallthru
      _
    %336 = vsyncpa [#allocation3], 1
    %337 = vsyncpa [#allocation5], 1

</llo_original>
